<compile_context>
chip_gen: v7x
topology: tpu7x:2x2x1
jax: 0.10.0
libtpu: 0.0.40
codegen_flags: <defaults>
</compile_context>

<pallas_src>
import functools
import math

import jax
import jax.numpy as jnp
from jax import lax
from jax.experimental import pallas as pl
from jax.experimental.pallas import tpu as pltpu


def _round_up(a, b):
    return -(-a // b) * b


def _default_num_cores():
    """1 for single-TensorCore chips (v5e/v6e), 2 for megacore (v4/v5p/v7x)."""
    try:
        kind = jax.devices()[0].device_kind.lower()
    except Exception:
        return 2
    if "lite" in kind or "v5e" in kind or "v6e" in kind or "v6" in kind:
        return 1
    return 2  # v4 / v5p / v7x.  (2 is correct everywhere, only wasteful on 1-TC.)


def _make_bce_kernel(row_tile, packed_cols, n_valid_rows, steps_per_core,
                     n_full_tiles, use_seg_matmul):
    """Kernel closure over static tiling parameters.

    Grid = (num_cores, steps); refs are
      (x_ref, y_ref[, seg_ref], sum_ref, cnt_ref, acc_sum, acc_cnt).
    """
    folds = row_tile // 8  # row_tile is always a multiple of 8

    def kernel(*refs):
        if use_seg_matmul:
            x_ref, y_ref, seg_ref, sum_ref, cnt_ref, acc_sum, acc_cnt = refs
        else:
            x_ref, y_ref, sum_ref, cnt_ref, acc_sum, acc_cnt = refs

        p = pl.program_id(0)  # "parallel" axis (megacore shard on 2-TC chips)
        i = pl.program_id(1)  # sequential row-tile axis

        @pl.when(i == 0)
        def _():
            acc_sum[...] = jnp.zeros_like(acc_sum)
            acc_cnt[...] = jnp.zeros_like(acc_cnt)

        x = x_ref[...].astype(jnp.float32)   # (TR, kC) lane-dense tile
        y = y_ref[...].astype(jnp.float32)   # (TR, kC)

        # Numerically stable BCE with logits.  The per-class weight is applied
        # by the wrapper on the per-lane partial sums (sum(w*l) == w*sum(l)).
        #   l = max(x, 0) - x*y + log(1 + exp(-|x|))
        loss = jnp.maximum(x, 0.0) - x * y + jnp.log1p(jnp.exp(-jnp.abs(x)))

        # Per-original-row activity test (PyTorch: labels.sum(-1) > 0).
        if use_seg_matmul:
            # bf16 matmul against a constant block-diagonal ones matrix on the
            # otherwise idle MXU (0/1 labels are exact in bf16; non-negative
            # soft labels stay sign-safe for the > 0 test).
            seg_sums = jnp.dot(y_ref[...].astype(jnp.bfloat16), seg_ref[...],
                               preferred_element_type=jnp.float32)
            active = seg_sums > 0.0                           # (TR, kC)
        else:
            # k == 1: one cross-lane row sum (XLU slot, off the VALU path).
            active = jnp.sum(y, axis=-1, keepdims=True) > 0.0  # (TR, 1)

        ones = jnp.ones_like(loss)

        def accumulate(mask):
            # Fold the (TR, kC) tile into the small (8, kC) accumulator with
            # vreg-aligned adds only (no cross-sublane work in the hot loop).
            # jnp.where selects (it does not multiply), so garbage VMEM
            # (possibly NaN/Inf) past the real rows cannot leak in.
            acc_sum[...] += jnp.where(mask, loss, 0.0).reshape(
                folds, 8, packed_cols).sum(axis=0)
            acc_cnt[...] += jnp.where(mask, ones, 0.0).reshape(
                folds, 8, packed_cols).sum(axis=0)

        tile = p * steps_per_core + i

        # Full tiles: no row-bound work at all (pl.when cold path is skipped).
        @pl.when(tile < n_full_tiles)
        def _():
            accumulate(active)

        # Ragged last tile / tiles duplicated by the core split: mask rows
        # past the real data against the static row bound.
        @pl.when(tile >= n_full_tiles)
        def _():
            rows = tile * row_tile + lax.broadcasted_iota(
                jnp.int32, (row_tile, 1), 0)
            accumulate(jnp.logical_and(active, rows < n_valid_rows))

        @pl.when(i == pl.num_programs(1) - 1)
        def _():
            # One 8-row sublane reduction per core; the tiny cross-lane sum
            # over (num_cores, 1, kC) is left to the wrapper.
            sum_ref[...] = jnp.sum(acc_sum[...], axis=0, keepdims=True
                                   ).reshape(1, 1, packed_cols)
            cnt_ref[...] = jnp.sum(acc_cnt[...], axis=0, keepdims=True
                                   ).reshape(1, 1, packed_cols)

    return kernel


def weighted_bce_with_logits_loss(logits, labels, weight=None, *,
                                  row_tile=4096, num_cores=None,
                                  max_packed_lanes=2048):
    """Pallas equivalent of WeightedBCEWithLogitsLoss (active-row gather + mean).

    logits / labels: arbitrary leading dims, same trailing dim C (any dtype,
    cast to f32 in-kernel).  weight: optional per-class weights of shape (C,).
    Returns a scalar f32 loss; NaN if no row is active (matches PyTorch's mean
    over an empty selection).
    """
    if num_cores is None:
        num_cores = _default_num_cores()
    return _bce_jit(logits, labels, weight, row_tile=int(row_tile),
                    num_cores=int(num_cores),
                    max_packed_lanes=int(max_packed_lanes))


@functools.partial(jax.jit,
                   static_argnames=("row_tile", "num_cores", "max_packed_lanes"))
def _bce_jit(logits, labels, weight, *, row_tile, num_cores, max_packed_lanes):
    C = labels.shape[-1]

    x = logits.reshape(-1, C)
    y = labels.reshape(-1, C)

    # ---- lane packing: keep the lane axis a multiple of 128 -----------------
    lcm = math.lcm(C, 128)
    if lcm <= max_packed_lanes:
        kC, k, col_pad = lcm, lcm // C, 0      # k original rows per packed row
    else:
        # Rare fallback (large awkward C): zero-pad the class axis; padded
        # lanes are excluded via zero weight + the lane_valid mask below.
        kC = _round_up(C, 128)
        k, col_pad = 1, kC - C
        x = jnp.pad(x, ((0, 0), (0, col_pad)))
        y = jnp.pad(y, ((0, 0), (0, col_pad)))

    n_rows = x.shape[0]
    row_pad = (-n_rows) % k
    if row_pad:
        # Padded rows have all-zero labels -> inactive -> contribute nothing.
        x = jnp.pad(x, ((0, row_pad), (0, 0)))
        y = jnp.pad(y, ((0, row_pad), (0, 0)))

    n_packed = x.shape[0] // k
    x = x.reshape(n_packed, kC)    # contiguous reshape: no HBM copy
    y = y.reshape(n_packed, kC)
    use_seg = k > 1

    # ---- per-lane class weight (applied outside the kernel) -----------------
    w_col = (jnp.ones((C,), jnp.float32) if weight is None
             else jnp.asarray(weight, jnp.float32).reshape(C))
    if col_pad:
        w_lane = jnp.concatenate([w_col, jnp.zeros((col_pad,), jnp.float32)])
        lane_valid = jnp.concatenate([jnp.ones((C,), jnp.float32),
                                      jnp.zeros((col_pad,), jnp.float32)])
    else:
        w_lane = jnp.tile(w_col, k)
        lane_valid = None   # every lane is a real class column

    # ---- tiling: biggest row tile that fits a conservative VMEM budget ------
    in_row_bytes = kC * (x.dtype.itemsize + y.dtype.itemsize)
    seg_bytes = 2 * kC * kC * 2 if use_seg else 0     # bf16, double-buffered
    acc_bytes = 2 * 8 * kC * 4
    budget = max(4 << 20, (28 << 20) - seg_bytes - acc_bytes)
    max_tr = max(8, (budget // (2 * in_row_bytes)) // 8 * 8)
    tr = min(max(8, row_tile // 8 * 8), max_tr, _round_up(n_packed, 8))

    n_tiles = -(-n_packed // tr)
    steps = -(-n_tiles // num_cores)
    grid = (num_cores, steps)
    # Only the last real tile can be ragged; duplicated (clamped) tiles also
    # take the masked path because their logical index is >= n_tiles.
    n_full_tiles = n_tiles if n_packed % tr == 0 else n_tiles - 1

    def data_map(p_, i_):
        # Clamp so tiles duplicated by the core split stay in bounds; the
        # kernel masks their rows out against the static row bound.
        return (jnp.minimum(p_ * steps + i_, n_tiles - 1), 0)

    inputs = [x, y]
    in_specs = [pl.BlockSpec((tr, kC), data_map),
                pl.BlockSpec((tr, kC), data_map)]
    if use_seg:
        seg = (lax.broadcasted_iota(jnp.int32, (kC, kC), 0) // C ==
               lax.broadcasted_iota(jnp.int32, (kC, kC), 1) // C
               ).astype(jnp.bfloat16)
        inputs.append(seg)
        in_specs.append(pl.BlockSpec((kC, kC), lambda p_, i_: (0, 0)))

    kernel = _make_bce_kernel(tr, kC, n_packed, steps, n_full_tiles, use_seg)

    elems = n_packed * kC
    cost = pl.CostEstimate(
        flops=int(elems * 10 + (2 * elems * kC if use_seg else elems)),
        transcendentals=int(2 * elems),
        bytes_accessed=int(x.size * x.dtype.itemsize +
                           y.size * y.dtype.itemsize),
    )
    vmem_need = 2 * tr * in_row_bytes + seg_bytes + acc_bytes
    vmem_limit = int(min(max(vmem_need + (2 << 20), 16 << 20), 48 << 20))

    sums, cnts = pl.pallas_call(
        kernel,
        out_shape=(jax.ShapeDtypeStruct((num_cores, 1, kC), jnp.float32),
                   jax.ShapeDtypeStruct((num_cores, 1, kC), jnp.float32)),
        grid_spec=pltpu.PrefetchScalarGridSpec(
            num_scalar_prefetch=0,
            grid=grid,
            in_specs=in_specs,
            out_specs=[
                pl.BlockSpec((1, 1, kC), lambda p_, i_: (p_, 0, 0)),
                pl.BlockSpec((1, 1, kC), lambda p_, i_: (p_, 0, 0)),
            ],
            scratch_shapes=[
                pltpu.VMEM((8, kC), jnp.float32),   # weighted-loss partials
                pltpu.VMEM((8, kC), jnp.float32),   # active-element counts
            ],
        ),
        compiler_params=pltpu.CompilerParams(
            dimension_semantics=("parallel", "arbitrary"),
            vmem_limit_bytes=vmem_limit),
        cost_estimate=cost,
    )(*inputs)

    # mean over all elements of the gathered (active) rows:
    #   sum(weight * bce * active) / (num_active_rows * C)
    num = jnp.sum(sums * w_lane)
    den = jnp.sum(cnts) if lane_valid is None else jnp.sum(cnts * lane_valid)
    # den == 0 (no active row) -> NaN, matching PyTorch's empty-selection mean.
    return num / den
    # TODO(synk): pos_weight is accepted by the PyTorch module but never
    # forwarded (it always passes pos_weight=None), so it is not implemented.


def _reference(logits, labels, weight=None):
    """Plain-JAX reference mirroring the PyTorch forward."""
    C = labels.shape[-1]
    x = logits.reshape(-1, C).astype(jnp.float32)
    y = labels.reshape(-1, C).astype(jnp.float32)
    active = jnp.sum(y, axis=-1) > 0
    w = (jnp.ones((C,), jnp.float32) if weight is None
         else jnp.asarray(weight, jnp.float32))
    l = (jnp.maximum(x, 0.0) - x * y + jnp.log1p(jnp.exp(-jnp.abs(x)))) * w[None, :]
    num = jnp.sum(l * active[:, None].astype(jnp.float32))
    den = jnp.sum(active.astype(jnp.float32)) * C
    return num / den


if __name__ == "__main__":
    key = jax.random.PRNGKey(0)

    def make_case(case_key, shape, p=0.25):
        k1, k2 = jax.random.split(case_key)
        lg = jax.random.normal(k1, shape, dtype=jnp.float32)
        lb = (jax.random.uniform(k2, shape) < p).astype(jnp.float32)
        flat = lb.reshape(-1, shape[-1])
        flat = flat.at[0].set(0.0).at[-1].set(0.0)  # force some inactive rows
        flat = flat.at[1, 0].set(1.0)               # force >= 1 active row
        return lg, flat.reshape(shape)

    checks = []

    # 1) main config (B, S, C) = (4, 8, 16) with per-class weights
    k0, key = jax.random.split(key)
    logits, labels = make_case(k0, (4, 8, 16))
    weight16 = 1.0 + 0.1 * jnp.arange(16, dtype=jnp.float32)
    checks.append((logits, labels, weight16))

    # 2) C = 24 (does not divide 128 -> lcm packing to 384 lanes), no weight
    k1, key = jax.random.split(key)
    logits, labels = make_case(k1, (2, 3, 24))
    checks.append((logits, labels, None))

    # 3) C = 128 (k == 1 row-sum path), no weight
    k2, key = jax.random.split(key)
    logits, labels = make_case(k2, (2, 5, 128))
    checks.append((logits, labels, None))

    # 4) C = 200 (lcm too large -> zero-padded class axis), with weights
    k3, key = jax.random.split(key)
    logits, labels = make_case(k3, (3, 4, 200))
    weight200 = 0.5 + 0.01 * jnp.arange(200, dtype=jnp.float32)
    checks.append((logits, labels, weight200))

    for lg, lb, w in checks:
        out = jax.block_until_ready(weighted_bce_with_logits_loss(lg, lb, w))
        ref = _reference(lg, lb, w)
        assert jnp.allclose(out, ref, rtol=1e-5, atol=1e-6), (lg.shape, out, ref)

    print("KERNEL_OK")
</pallas_src>

<mosaic_0001>
module attributes {stable_mosaic.version = 11 : i64} {
  func.func @kernel(%arg0: i32, %arg1: i32, %arg2: memref<8x128xf32, #tpu.memory_space<vmem>>, %arg3: memref<8x128xf32, #tpu.memory_space<vmem>>, %arg4: memref<128x128xbf16, #tpu.memory_space<vmem>>, %arg5: memref<1x1x128xf32, #tpu.memory_space<vmem>>, %arg6: memref<1x1x128xf32, #tpu.memory_space<vmem>>, %arg7: memref<8x128xf32, #tpu.memory_space<vmem>>, %arg8: memref<8x128xf32, #tpu.memory_space<vmem>>) attributes {dimension_semantics = [#tpu.dimension_semantics<parallel>, #tpu.dimension_semantics<arbitrary>], iteration_bounds = array<i64: 2, 1>, scalar_prefetch = 0 : i64, scratch_operands = 2 : i64, tpu.core_type = #tpu.core_type<tc>, window_params = [{transform_indices = @transform_0, window_bounds = array<i64: 8, 128>}, {transform_indices = @transform_1, window_bounds = array<i64: 8, 128>}, {pipeline_mode = #tpu.pipeline_mode<synchronous>, transform_indices = @transform_2, window_bounds = array<i64: 128, 128>}, {transform_indices = @transform_3, window_bounds = array<i64: 1, 1, 128>}, {transform_indices = @transform_4, window_bounds = array<i64: 1, 1, 128>}]} {
    %c0_i32 = arith.constant 0 : i32
    %0 = arith.cmpi eq, %arg1, %c0_i32 : i32
    %1 = arith.extui %0 : i1 to i32
    %c0_i32_0 = arith.constant 0 : i32
    %2 = arith.cmpi ne, %1, %c0_i32_0 : i32
    scf.if %2 {
      %cst_18 = arith.constant 0.000000e+00 : f32
      %33 = vector.broadcast %cst_18 : f32 to vector<8x128xf32>
      %c0_19 = arith.constant 0 : index
      %c0_20 = arith.constant 0 : index
      %34 = vector.load %arg7[%c0_19, %c0_20] : memref<8x128xf32, #tpu.memory_space<vmem>>, vector<8x128xf32>
      tpu.vector_store %arg7[%c0_19, %c0_20], %33 {strides = array<i32>} : memref<8x128xf32, #tpu.memory_space<vmem>>, vector<8x128xf32>,
      %cst_21 = arith.constant 0.000000e+00 : f32
      %35 = vector.broadcast %cst_21 : f32 to vector<8x128xf32>
      %c0_22 = arith.constant 0 : index
      %c0_23 = arith.constant 0 : index
      %36 = vector.load %arg8[%c0_22, %c0_23] : memref<8x128xf32, #tpu.memory_space<vmem>>, vector<8x128xf32>
      tpu.vector_store %arg8[%c0_22, %c0_23], %35 {strides = array<i32>} : memref<8x128xf32, #tpu.memory_space<vmem>>, vector<8x128xf32>,
    } else {
    }
    %c0 = arith.constant 0 : index
    %c0_1 = arith.constant 0 : index
    %3 = vector.load %arg2[%c0, %c0_1] : memref<8x128xf32, #tpu.memory_space<vmem>>, vector<8x128xf32>
    %c0_2 = arith.constant 0 : index
    %c0_3 = arith.constant 0 : index
    %4 = vector.load %arg3[%c0_2, %c0_3] : memref<8x128xf32, #tpu.memory_space<vmem>>, vector<8x128xf32>
    %cst = arith.constant 0.000000e+00 : f32
    %5 = vector.broadcast %cst : f32 to vector<8x128xf32>
    %6 = arith.maximumf %3, %5 : vector<8x128xf32>
    %7 = arith.mulf %3, %4 : vector<8x128xf32>
    %8 = arith.subf %6, %7 : vector<8x128xf32>
    %9 = math.absf %3 : vector<8x128xf32>
    %cst_4 = arith.constant 0.000000e+00 : f32
    %10 = vector.broadcast %cst_4 : f32 to vector<8x128xf32>
    %11 = arith.subf %10, %9 : vector<8x128xf32>
    %12 = math.exp %11 : vector<8x128xf32>
    %13 = math.log1p %12 : vector<8x128xf32>
    %14 = arith.addf %8, %13 : vector<8x128xf32>
    %c0_5 = arith.constant 0 : index
    %c0_6 = arith.constant 0 : index
    %15 = vector.load %arg3[%c0_5, %c0_6] : memref<8x128xf32, #tpu.memory_space<vmem>>, vector<8x128xf32>
    %16 = arith.truncf %15 : vector<8x128xf32> to vector<8x128xbf16>
    %c0_7 = arith.constant 0 : index
    %c0_8 = arith.constant 0 : index
    %17 = vector.load %arg4[%c0_7, %c0_8] : memref<128x128xbf16, #tpu.memory_space<vmem>>, vector<128x128xbf16>
    %cst_9 = arith.constant dense<0.000000e+00> : vector<8x128xf32>
    %18 = tpu.matmul %16, %17, %cst_9 {dimension_numbers = #tpu.dot_dimension_numbers<[1], [0], [0], [1], [0, 0, 1, 1], [], []>} : vector<8x128xbf16>, vector<128x128xbf16>, vector<8x128xf32> -> vector<8x128xf32>
    %cst_10 = arith.constant 0.000000e+00 : f32
    %19 = vector.broadcast %cst_10 : f32 to vector<8x128xf32>
    %20 = arith.cmpf ogt, %18, %19 : vector<8x128xf32>
    %cst_11 = arith.constant 1.000000e+00 : f32
    %21 = vector.broadcast %cst_11 : f32 to vector<8x128xf32>
    %c1_i32 = arith.constant 1 : i32
    %22 = arith.muli %arg0, %c1_i32 : i32
    %23 = arith.addi %22, %arg1 : i32
    %c0_i32_12 = arith.constant 0 : i32
    %24 = arith.cmpi slt, %23, %c0_i32_12 : i32
    %25 = arith.extui %24 : i1 to i32
    %c0_i32_13 = arith.constant 0 : i32
    %26 = arith.cmpi ne, %25, %c0_i32_13 : i32
    scf.if %26 {
      %c0_18 = arith.constant 0 : index
      %c0_19 = arith.constant 0 : index
      %33 = vector.load %arg7[%c0_18, %c0_19] : memref<8x128xf32, #tpu.memory_space<vmem>>, vector<8x128xf32>
      %cst_20 = arith.constant 0.000000e+00 : f32
      %34 = vector.broadcast %cst_20 : f32 to vector<8x128xf32>
      %35 = arith.select %20, %14, %34 : vector<8x128xi1>, vector<8x128xf32>
      %36 = vector.shape_cast %35 : vector<8x128xf32> to vector<1x8x128xf32>
      %cst_21 = arith.constant dense<0.000000e+00> : vector<8x128xf32>
      %37 = vector.multi_reduction <add>, %36, %cst_21 [0] : vector<1x8x128xf32> to vector<8x128xf32>
      %38 = arith.addf %33, %37 : vector<8x128xf32>
      %c0_22 = arith.constant 0 : index
      %c0_23 = arith.constant 0 : index
      %39 = vector.load %arg7[%c0_22, %c0_23] : memref<8x128xf32, #tpu.memory_space<vmem>>, vector<8x128xf32>
      tpu.vector_store %arg7[%c0_22, %c0_23], %38 {strides = array<i32>} : memref<8x128xf32, #tpu.memory_space<vmem>>, vector<8x128xf32>,
      %c0_24 = arith.constant 0 : index
      %c0_25 = arith.constant 0 : index
      %40 = vector.load %arg8[%c0_24, %c0_25] : memref<8x128xf32, #tpu.memory_space<vmem>>, vector<8x128xf32>
      %cst_26 = arith.constant 0.000000e+00 : f32
      %41 = vector.broadcast %cst_26 : f32 to vector<8x128xf32>
      %42 = arith.select %20, %21, %41 : vector<8x128xi1>, vector<8x128xf32>
      %43 = vector.shape_cast %42 : vector<8x128xf32> to vector<1x8x128xf32>
      %cst_27 = arith.constant dense<0.000000e+00> : vector<8x128xf32>
      %44 = vector.multi_reduction <add>, %43, %cst_27 [0] : vector<1x8x128xf32> to vector<8x128xf32>
      %45 = arith.addf %40, %44 : vector<8x128xf32>
      %c0_28 = arith.constant 0 : index
      %c0_29 = arith.constant 0 : index
      %46 = vector.load %arg8[%c0_28, %c0_29] : memref<8x128xf32, #tpu.memory_space<vmem>>, vector<8x128xf32>
      tpu.vector_store %arg8[%c0_28, %c0_29], %45 {strides = array<i32>} : memref<8x128xf32, #tpu.memory_space<vmem>>, vector<8x128xf32>,
    } else {
    }
    %c0_i32_14 = arith.constant 0 : i32
    %27 = arith.cmpi sge, %23, %c0_i32_14 : i32
    %28 = arith.extui %27 : i1 to i32
    %c0_i32_15 = arith.constant 0 : i32
    %29 = arith.cmpi ne, %28, %c0_i32_15 : i32
    scf.if %29 {
      %c8_i32 = arith.constant 8 : i32
      %33 = arith.muli %23, %c8_i32 : i32
      %34 = tpu.iota {dimensions = array<i32: 0>} : vector<8x1xi32>
      %35 = vector.broadcast %33 : i32 to vector<8x1xi32>
      %36 = arith.addi %35, %34 : vector<8x1xi32>
      %c4_i32 = arith.constant 4 : i32
      %37 = vector.broadcast %c4_i32 : i32 to vector<8x1xi32>
      %38 = arith.cmpi slt, %36, %37 : vector<8x1xi32>
      %39 = vector.broadcast %38 : vector<8x1xi1> to vector<8x128xi1>
      %40 = arith.andi %20, %39 : vector<8x128xi1>
      %c0_18 = arith.constant 0 : index
      %c0_19 = arith.constant 0 : index
      %41 = vector.load %arg7[%c0_18, %c0_19] : memref<8x128xf32, #tpu.memory_space<vmem>>, vector<8x128xf32>
      %cst_20 = arith.constant 0.000000e+00 : f32
      %42 = vector.broadcast %cst_20 : f32 to vector<8x128xf32>
      %43 = arith.select %40, %14, %42 : vector<8x128xi1>, vector<8x128xf32>
      %44 = vector.shape_cast %43 : vector<8x128xf32> to vector<1x8x128xf32>
      %cst_21 = arith.constant dense<0.000000e+00> : vector<8x128xf32>
      %45 = vector.multi_reduction <add>, %44, %cst_21 [0] : vector<1x8x128xf32> to vector<8x128xf32>
      %46 = arith.addf %41, %45 : vector<8x128xf32>
      %c0_22 = arith.constant 0 : index
      %c0_23 = arith.constant 0 : index
      %47 = vector.load %arg7[%c0_22, %c0_23] : memref<8x128xf32, #tpu.memory_space<vmem>>, vector<8x128xf32>
      tpu.vector_store %arg7[%c0_22, %c0_23], %46 {strides = array<i32>} : memref<8x128xf32, #tpu.memory_space<vmem>>, vector<8x128xf32>,
      %c0_24 = arith.constant 0 : index
      %c0_25 = arith.constant 0 : index
      %48 = vector.load %arg8[%c0_24, %c0_25] : memref<8x128xf32, #tpu.memory_space<vmem>>, vector<8x128xf32>
      %cst_26 = arith.constant 0.000000e+00 : f32
      %49 = vector.broadcast %cst_26 : f32 to vector<8x128xf32>
      %50 = arith.select %40, %21, %49 : vector<8x128xi1>, vector<8x128xf32>
      %51 = vector.shape_cast %50 : vector<8x128xf32> to vector<1x8x128xf32>
      %cst_27 = arith.constant dense<0.000000e+00> : vector<8x128xf32>
      %52 = vector.multi_reduction <add>, %51, %cst_27 [0] : vector<1x8x128xf32> to vector<8x128xf32>
      %53 = arith.addf %48, %52 : vector<8x128xf32>
      %c0_28 = arith.constant 0 : index
      %c0_29 = arith.constant 0 : index
      %54 = vector.load %arg8[%c0_28, %c0_29] : memref<8x128xf32, #tpu.memory_space<vmem>>, vector<8x128xf32>
      tpu.vector_store %arg8[%c0_28, %c0_29], %53 {strides = array<i32>} : memref<8x128xf32, #tpu.memory_space<vmem>>, vector<8x128xf32>,
    } else {
    }
    %c0_i32_16 = arith.constant 0 : i32
    %30 = arith.cmpi eq, %arg1, %c0_i32_16 : i32
    %31 = arith.extui %30 : i1 to i32
    %c0_i32_17 = arith.constant 0 : i32
    %32 = arith.cmpi ne, %31, %c0_i32_17 : i32
    scf.if %32 {
      %c0_18 = arith.constant 0 : index
      %c0_19 = arith.constant 0 : index
      %33 = vector.load %arg7[%c0_18, %c0_19] : memref<8x128xf32, #tpu.memory_space<vmem>>, vector<8x128xf32>
      %cst_20 = arith.constant dense<0.000000e+00> : vector<128xf32>
      %34 = vector.multi_reduction <add>, %33, %cst_20 [0] : vector<8x128xf32> to vector<128xf32>
      %35 = vector.shape_cast %34 : vector<128xf32> to vector<1x128xf32>
      %36 = vector.shape_cast %35 : vector<1x128xf32> to vector<1x1x128xf32>
      %c0_21 = arith.constant 0 : index
      %c0_22 = arith.constant 0 : index
      %c0_23 = arith.constant 0 : index
      %37 = vector.load %arg5[%c0_21, %c0_22, %c0_23] : memref<1x1x128xf32, #tpu.memory_space<vmem>>, vector<1x1x128xf32>
      tpu.vector_store %arg5[%c0_21, %c0_22, %c0_23], %36 {strides = array<i32>} : memref<1x1x128xf32, #tpu.memory_space<vmem>>, vector<1x1x128xf32>,
      %c0_24 = arith.constant 0 : index
      %c0_25 = arith.constant 0 : index
      %38 = vector.load %arg8[%c0_24, %c0_25] : memref<8x128xf32, #tpu.memory_space<vmem>>, vector<8x128xf32>
      %cst_26 = arith.constant dense<0.000000e+00> : vector<128xf32>
      %39 = vector.multi_reduction <add>, %38, %cst_26 [0] : vector<8x128xf32> to vector<128xf32>
      %40 = vector.shape_cast %39 : vector<128xf32> to vector<1x128xf32>
      %41 = vector.shape_cast %40 : vector<1x128xf32> to vector<1x1x128xf32>
      %c0_27 = arith.constant 0 : index
      %c0_28 = arith.constant 0 : index
      %c0_29 = arith.constant 0 : index
      %42 = vector.load %arg6[%c0_27, %c0_28, %c0_29] : memref<1x1x128xf32, #tpu.memory_space<vmem>>, vector<1x1x128xf32>
      tpu.vector_store %arg6[%c0_27, %c0_28, %c0_29], %41 {strides = array<i32>} : memref<1x1x128xf32, #tpu.memory_space<vmem>>, vector<1x1x128xf32>,
    } else {
    }
    return
  }
  func.func @transform_0(%arg0: i32, %arg1: i32) -> (i32, i32) {
    %c1_i32 = arith.constant 1 : i32
    %0 = arith.muli %arg0, %c1_i32 : i32
    %1 = arith.addi %0, %arg1 : i32
    %c0_i32 = arith.constant 0 : i32
    %2 = arith.minsi %1, %c0_i32 : i32
    %c0_i32_0 = arith.constant 0 : i32
    %c0_i32_1 = arith.constant 0 : i32
    return %2, %c0_i32_0 : i32, i32
  }
  func.func @transform_1(%arg0: i32, %arg1: i32) -> (i32, i32) {
    %c1_i32 = arith.constant 1 : i32
    %0 = arith.muli %arg0, %c1_i32 : i32
    %1 = arith.addi %0, %arg1 : i32
    %c0_i32 = arith.constant 0 : i32
    %2 = arith.minsi %1, %c0_i32 : i32
    %c0_i32_0 = arith.constant 0 : i32
    %c0_i32_1 = arith.constant 0 : i32
    return %2, %c0_i32_0 : i32, i32
  }
  func.func @transform_2(%arg0: i32, %arg1: i32) -> (i32, i32) {
    %c0_i32 = arith.constant 0 : i32
    %c0_i32_0 = arith.constant 0 : i32
    %c0_i32_1 = arith.constant 0 : i32
    return %c0_i32, %c0_i32_0 : i32, i32
  }
  func.func @transform_3(%arg0: i32, %arg1: i32) -> (i32, i32, i32) {
    %c0_i32 = arith.constant 0 : i32
    %c0_i32_0 = arith.constant 0 : i32
    %c0_i32_1 = arith.constant 0 : i32
    return %arg0, %c0_i32, %c0_i32_0 : i32, i32, i32
  }
  func.func @transform_4(%arg0: i32, %arg1: i32) -> (i32, i32, i32) {
    %c0_i32 = arith.constant 0 : i32
    %c0_i32_0 = arith.constant 0 : i32
    %c0_i32_1 = arith.constant 0 : i32
    return %arg0, %c0_i32, %c0_i32_0 : i32, i32, i32
  }
}

</mosaic_0001>

<llo_original>
// kernel: tile.8
$region0: #{tile.8}
  #allocation0 [shape = 's32[1]{0}', space=sflag, size = 0x4, scoped, tag = 'scoped memory for tile.8']
  %s0 = inlined_call_operand.vmem [shape: f32[16], index: 0, kind: input, shape index: {}]
  %s1 = inlined_call_operand.vmem [shape: f32[8,16], index: 1, kind: output, shape index: {}]
  // Predicated region
  $region2: #{tile.8} parent=0 // pred_check
    _
  $region3: #{tile.8} parent=0 // pred_check_branch
    %3 = sbr.rel (0) target = $region5
  $region4: #{tile.8} parent=0 // pred_region
    _
  $region5: #{tile.8} parent=0 // pred_fallthru
    _
  %v4 = vld [vmem:[%s0] ss:$0 sm:$0xff]
  %5 = vst [vmem:[%s1] sm:$0xff] %v4

// kernel: _bce_jit.1
$region0: #{_bce_jit.1}
  #allocation0 [shape = 'u32[]', space=smem, size = 0x4, offset = 0x4, fixed_abs, tag = 'smem constant byte address 0x4 - core index']
  #allocation1 [shape = 'u32[144,128]{1,0:T(1,128)}', space=vmem, size = 0x12000, scoped, tag = 'internal scratch']
  #allocation2 [shape = 'f32[8,128]{1,0:T(8,128)}', space=vmem, size = 0x1000, scoped, tag = 'scratch operand']
  #allocation3 [shape = 'f32[8,128]{1,0:T(8,128)}', space=vmem, size = 0x1000, scoped, tag = 'scratch operand']
  %s0 = inlined_call_operand.vmem [shape: f32[4,128], index: 0, kind: input, shape index: {}]
  %s1 = inlined_call_operand.vmem [shape: f32[4,128], index: 1, kind: input, shape index: {}]
  %s2 = inlined_call_operand.vmem [shape: bf16[128,128], index: 2, kind: input, shape index: {}]
  %s3 = inlined_call_operand.vmem [shape: f32[2,1,128], index: 3, kind: output, shape index: {0}]
  %s4 = inlined_call_operand.vmem [shape: f32[2,1,128], index: 4, kind: output, shape index: {1}]
  %5 = xla_tuple %s3, %s4
  %s6 = sld [smem:[#allocation0]]
  $region69: #{_bce_jit.1} parent=0
    _
  %s8 = ssub.s32 1, %s6
  %s9 = scalar_select 0, %s8, %s6
  loop: start=0, step=1, limit=4
  $region2: #{_bce_jit.1} parent=0 // loop_pre_header
    _
  $region3: #{_bce_jit.1} parent=0 // loop_header
    %s11 = sphi 0, %s15
    %p12 = scmp.ge.s32.totalorder %s11, 4
    %s18 = sphi 0, %s30
    %s19 = sphi 0, %s26
    %s20 = sphi 0, %s18
    %s21 = sphi 0, %s19
    %s22 = sphi 0, %s20
    %s23 = sphi 0, %s21
    %s39 = sphi 0, %s41
    %s42 = sphi 0, %s39
    %s43 = sphi 0, %s42
    %s59 = sphi 0, %s43
    %s71 = sphi 0, %s73
    %s74 = sphi 0, %s71
    %s75 = sphi 0, %s74
    %s91 = sphi 0, %s75
    %s95 = sphi 0, %s95
    %s97 = sphi 0, %s95
    %s98 = sphi 0, %s97
    %s112 = sphi 0, %s98
    %s118 = sphi 0, %s120
    %s121 = sphi 0, %s118
    %s122 = sphi 0, %s121
    %s138 = sphi 0, %s122
    %s144 = sphi 0, %s146
    %s147 = sphi 0, %s144
    %s148 = sphi 0, %s147
    %s164 = sphi 0, %s148
  $region4: #{_bce_jit.1} parent=0 // loop_header_branch
    %14 = sbr.rel (%p12) target = $region8
  $region5: #{_bce_jit.1} parent=0 // loop_body
    %s16 = ssub.s32 %s11, 1
    %s17 = ssub.s32 %s11, 2
    %s24 = sadd.s32 1, %s19
    %p25 = scmp.ge.s32.totalorder %s24, 1
    %s26 = scalar_select %p25, 0, %s24
    %s27 = sadd.s32 1, %s18
    %s28 = scalar_select %p25, %s27, %s18
    %p29 = scmp.ge.s32.totalorder %s28, 2
    %s30 = scalar_select %p29, 0, %s28
    %s31 = sadd.s32 %s18, %s19
    %p32 = scmp.lt.s32.totalorder %s31, 0
    %s33 = scalar_select %p32, %s31, 0
    %s34 = sadd.s32 %s30, %s26
    %p35 = scmp.lt.s32.totalorder %s34, 0
    %s36 = scalar_select %p35, %s34, 0
    %s37 = ssub.s32 %s33, %s36
    %p38 = scmp.eq.s32.totalorder %s37, 0
    %s40 = sadd.s32 %s39, 1
    %s41 = scalar_select %p38, %s39, %s40
    %p44 = pneg %p38
    %p45 = scmp.eq.s32.totalorder %s11, 1
    %p46 = por %p44, %p45
    %p47 = scmp.ne.s32.totalorder %s39, %s42
    %p48 = scmp.eq.s32.totalorder %s11, 0
    %p49 = por %p47, %p48
    %p50 = scmp.ne.s32.totalorder %s39, %s42
    %p51 = scmp.eq.s32.totalorder %s16, 1
    %p52 = por %p50, %p51
    %p53 = scmp.ne.s32.totalorder %s42, %s43
    %p54 = scmp.eq.s32.totalorder %s16, 0
    %p55 = por %p53, %p54
    %p56 = scmp.ne.s32.totalorder %s42, %s43
    %p57 = scmp.eq.s32.totalorder %s17, 1
    %p58 = por %p56, %p57
    %p60 = scmp.ne.s32.totalorder %s43, %s59
    %p61 = scmp.eq.s32.totalorder %s17, 0
    %p62 = por %p60, %p61
    %s63 = sadd.s32 %s18, %s19
    %p64 = scmp.lt.s32.totalorder %s63, 0
    %s65 = scalar_select %p64, %s63, 0
    %s66 = sadd.s32 %s30, %s26
    %p67 = scmp.lt.s32.totalorder %s66, 0
    %s68 = scalar_select %p67, %s66, 0
    %s69 = ssub.s32 %s65, %s68
    %p70 = scmp.eq.s32.totalorder %s69, 0
    %s72 = sadd.s32 %s71, 1
    %s73 = scalar_select %p70, %s71, %s72
    %p76 = pneg %p70
    %p77 = scmp.eq.s32.totalorder %s11, 1
    %p78 = por %p76, %p77
    %p79 = scmp.ne.s32.totalorder %s71, %s74
    %p80 = scmp.eq.s32.totalorder %s11, 0
    %p81 = por %p79, %p80
    %p82 = scmp.ne.s32.totalorder %s71, %s74
    %p83 = scmp.eq.s32.totalorder %s16, 1
    %p84 = por %p82, %p83
    %p85 = scmp.ne.s32.totalorder %s74, %s75
    %p86 = scmp.eq.s32.totalorder %s16, 0
    %p87 = por %p85, %p86
    %p88 = scmp.ne.s32.totalorder %s74, %s75
    %p89 = scmp.eq.s32.totalorder %s17, 1
    %p90 = por %p88, %p89
    %p92 = scmp.ne.s32.totalorder %s75, %s91
    %p93 = scmp.eq.s32.totalorder %s17, 0
    %p94 = por %p92, %p93
    %s96 = sadd.s32 %s95, 1
    %p99 = scmp.eq.s32.totalorder %s11, 1
    %p100 = scmp.ne.s32.totalorder %s95, %s97
    %p101 = scmp.eq.s32.totalorder %s11, 0
    %p102 = por %p100, %p101
    %p103 = scmp.ne.s32.totalorder %s95, %s97
    %p104 = scmp.eq.s32.totalorder %s16, 1
    %p105 = por %p103, %p104
    %p106 = scmp.ne.s32.totalorder %s97, %s98
    %p107 = scmp.eq.s32.totalorder %s16, 0
    %p108 = por %p106, %p107
    %p109 = scmp.ne.s32.totalorder %s97, %s98
    %p110 = scmp.eq.s32.totalorder %s17, 1
    %p111 = por %p109, %p110
    %p113 = scmp.ne.s32.totalorder %s98, %s112
    %p114 = scmp.eq.s32.totalorder %s17, 0
    %p115 = por %p113, %p114
    %s116 = ssub.s32 %s18, %s30
    %p117 = scmp.eq.s32.totalorder %s116, 0
    %s119 = sadd.s32 %s118, 1
    %s120 = scalar_select %p117, %s118, %s119
    %p123 = pneg %p117
    %p124 = scmp.eq.s32.totalorder %s11, 1
    %p125 = por %p123, %p124
    %p126 = scmp.ne.s32.totalorder %s118, %s121
    %p127 = scmp.eq.s32.totalorder %s11, 0
    %p128 = por %p126, %p127
    %p129 = scmp.ne.s32.totalorder %s118, %s121
    %p130 = scmp.eq.s32.totalorder %s16, 1
    %p131 = por %p129, %p130
    %p132 = scmp.ne.s32.totalorder %s121, %s122
    %p133 = scmp.eq.s32.totalorder %s16, 0
    %p134 = por %p132, %p133
    %p135 = scmp.ne.s32.totalorder %s121, %s122
    %p136 = scmp.eq.s32.totalorder %s17, 1
    %p137 = por %p135, %p136
    %p139 = scmp.ne.s32.totalorder %s122, %s138
    %p140 = scmp.eq.s32.totalorder %s17, 0
    %p141 = por %p139, %p140
    %s142 = ssub.s32 %s18, %s30
    %p143 = scmp.eq.s32.totalorder %s142, 0
    %s145 = sadd.s32 %s144, 1
    %s146 = scalar_select %p143, %s144, %s145
    %p149 = pneg %p143
    %p150 = scmp.eq.s32.totalorder %s11, 1
    %p151 = por %p149, %p150
    %p152 = scmp.ne.s32.totalorder %s144, %s147
    %p153 = scmp.eq.s32.totalorder %s11, 0
    %p154 = por %p152, %p153
    %p155 = scmp.ne.s32.totalorder %s144, %s147
    %p156 = scmp.eq.s32.totalorder %s16, 1
    %p157 = por %p155, %p156
    %p158 = scmp.ne.s32.totalorder %s147, %s148
    %p159 = scmp.eq.s32.totalorder %s16, 0
    %p160 = por %p158, %p159
    %p161 = scmp.ne.s32.totalorder %s147, %s148
    %p162 = scmp.eq.s32.totalorder %s17, 1
    %p163 = por %p161, %p162
    %p165 = scmp.ne.s32.totalorder %s148, %s164
    %p166 = scmp.eq.s32.totalorder %s17, 0
    %p167 = por %p165, %p166
    %p168 = scmp.le.s32.totalorder 1, %s11
    %p169 = scmp.lt.s32.totalorder %s11, 3
    %p170 = pnand %p168, %p169
    %p171 = pneg %p170
    // Predicated region
    $region9: #{_bce_jit.1} parent=5 // pred_check
      _
    $region10: #{_bce_jit.1} parent=5 // pred_check_branch
      %173 = sbr.rel (%p170) target = $region12
    $region11: #{_bce_jit.1} parent=5 // pred_region
      %s174 = ssub.s32 %s11, 1
      // Predicated region
      $region13: #{_bce_jit.1} parent=11 // pred_check
        %p175 = pneg %p108
      $region14: #{_bce_jit.1} parent=11 // pred_check_branch
        %177 = sbr.rel (%p175) target = $region16
      $region15: #{_bce_jit.1} parent=11 // pred_region
        _
      $region16: #{_bce_jit.1} parent=11 // pred_fallthru
        _
    $region12: #{_bce_jit.1} parent=5 // pred_fallthru
      _
    %p178 = scmp.lt.s32.totalorder %s11, 2
    // Predicated region
    $region17: #{_bce_jit.1} parent=5 // pred_check
      %p179 = pneg %p178
    $region18: #{_bce_jit.1} parent=5 // pred_check_branch
      %181 = sbr.rel (%p179) target = $region20
    $region19: #{_bce_jit.1} parent=5 // pred_region
      // Predicated region
      $region21: #{_bce_jit.1} parent=19 // pred_check
        %p182 = pneg %p49
      $region22: #{_bce_jit.1} parent=19 // pred_check_branch
        %184 = sbr.rel (%p182) target = $region24
      $region23: #{_bce_jit.1} parent=19 // pred_region
        %s185 = sadd.s32 %s18, %s19
        %p186 = scmp.lt.s32.totalorder %s185, 0
        %s187 = scalar_select %p186, %s185, 0
        %s188 = smul.u32 2, %s187
        %s189 = ssub.s32 1, %s188
        %s190 = smul.u32 64, %s189
        %p191 = scmp.lt.s32.totalorder %s188, 0
        %s192 = scalar_select %p191, %s188, 0
        %s193 = smul.addr %s192, 4
        %s194 = scalar_lea.vmem %s0, %s193
        %s195 = sadd.s32 %s18, %s19
        %p196 = scmp.lt.s32.totalorder %s195, 0
        %s197 = scalar_select %p196, %s195, 0
        %s198 = smul.u32 2, %s197
        %s199 = ssub.s32 1, %s198
        %s200 = smul.u32 64, %s199
      $region24: #{_bce_jit.1} parent=19 // pred_fallthru
        _
      // Predicated region
      $region25: #{_bce_jit.1} parent=19 // pred_check
        %p201 = pneg %p81
      $region26: #{_bce_jit.1} parent=19 // pred_check_branch
        %203 = sbr.rel (%p201) target = $region28
      $region27: #{_bce_jit.1} parent=19 // pred_region
        %s204 = sadd.s32 %s18, %s19
        %p205 = scmp.lt.s32.totalorder %s204, 0
        %s206 = scalar_select %p205, %s204, 0
        %s207 = smul.u32 2, %s206
        %s208 = ssub.s32 1, %s207
        %s209 = smul.u32 64, %s208
        %p210 = scmp.lt.s32.totalorder %s207, 0
        %s211 = scalar_select %p210, %s207, 0
        %s212 = smul.addr %s211, 4
        %s213 = scalar_lea.vmem %s1, %s212
        %s214 = sadd.s32 %s18, %s19
        %p215 = scmp.lt.s32.totalorder %s214, 0
        %s216 = scalar_select %p215, %s214, 0
        %s217 = smul.u32 2, %s216
        %s218 = ssub.s32 1, %s217
        %s219 = smul.u32 64, %s218
      $region28: #{_bce_jit.1} parent=19 // pred_fallthru
        _
    $region20: #{_bce_jit.1} parent=5 // pred_fallthru
      _
    %p220 = scmp.le.s32.totalorder 1, %s11
    %p221 = scmp.lt.s32.totalorder %s11, 3
    %p222 = pnand %p220, %p221
    %p223 = pneg %p222
    // Predicated region
    $region29: #{_bce_jit.1} parent=5 // pred_check
      _
    $region30: #{_bce_jit.1} parent=5 // pred_check_branch
      %225 = sbr.rel (%p222) target = $region32
    $region31: #{_bce_jit.1} parent=5 // pred_region
      %s226 = ssub.s32 %s11, 1
      %s227 = sadd.s32 %s20, %s21
      %p228 = scmp.lt.s32.totalorder %s227, 0
      %s229 = scalar_select %p228, %s227, 0
      %s230 = smul.u32 2, %s229
      %s231 = ssub.s32 1, %s230
      %s232 = smul.u32 64, %s231
      %p233 = scmp.lt.s32.totalorder %s230, 0
      %s234 = scalar_select %p233, %s230, 0
      %s235 = smul.addr %s234, 4
      %s236 = scalar_lea.vmem %s0, %s235
      %p237 = pneg %p55
      %p238 = pneg %p52
      %s239 = sadd.s32 %s20, %s21
      %p240 = scmp.lt.s32.totalorder %s239, 0
      %s241 = scalar_select %p240, %s239, 0
      %s242 = smul.u32 2, %s241
      %s243 = ssub.s32 1, %s242
      %s244 = smul.u32 64, %s243
      %p245 = scmp.lt.s32.totalorder %s242, 0
      %s246 = scalar_select %p245, %s242, 0
      %s247 = smul.addr %s246, 4
      %s248 = scalar_lea.vmem %s1, %s247
      %p249 = pneg %p87
      %p250 = pneg %p84
      %p251 = pneg %p108
      %p252 = pneg %p105
      %p253 = pneg %p134
      %p254 = pneg %p131
      %p255 = scmp.lt.s32.totalorder %s20, 1
      %s256 = scalar_select %p255, %s20, 1
      %s257 = scalar_lea.vmem %s3, %s256
      %p258 = pneg %p160
      %p259 = pneg %p157
      %p260 = scmp.lt.s32.totalorder %s20, 1
      %s261 = scalar_select %p260, %s20, 1
      %s262 = scalar_lea.vmem %s4, %s261
      %s263 = sadd.s32 %s20, %s21
      %p264 = scmp.lt.s32.totalorder %s263, 0
      %s265 = scalar_select %p264, %s263, 0
      %s266 = smul.u32 2, %s265
      %s267 = ssub.s32 1, %s266
      %s268 = smul.u32 64, %s267
      %p269 = scmp.lt.s32.totalorder %s266, 0
      %s270 = scalar_select %p269, %s266, 0
      %s271 = smul.addr %s270, 4
      %s272 = scalar_lea.vmem %s0, %s271
      %s273 = sadd.s32 %s20, %s21
      %p274 = scmp.lt.s32.totalorder %s273, 0
      %s275 = scalar_select %p274, %s273, 0
      %s276 = smul.u32 2, %s275
      %s277 = ssub.s32 1, %s276
      %s278 = smul.u32 64, %s277
      %s279 = sadd.s32 %s20, %s21
      %p280 = scmp.lt.s32.totalorder %s279, 0
      %s281 = scalar_select %p280, %s279, 0
      %s282 = smul.u32 2, %s281
      %s283 = ssub.s32 1, %s282
      %s284 = smul.u32 64, %s283
      %p285 = scmp.lt.s32.totalorder %s282, 0
      %s286 = scalar_select %p285, %s282, 0
      %s287 = smul.addr %s286, 4
      %s288 = scalar_lea.vmem %s1, %s287
      %s289 = sadd.s32 %s20, %s21
      %p290 = scmp.lt.s32.totalorder %s289, 0
      %s291 = scalar_select %p290, %s289, 0
      %s292 = smul.u32 2, %s291
      %s293 = ssub.s32 1, %s292
      %s294 = smul.u32 64, %s293
      %p295 = scmp.lt.s32.totalorder %s20, 1
      %s296 = scalar_select %p295, %s20, 1
      %s297 = scalar_lea.vmem %s3, %s296
      %p298 = scmp.lt.s32.totalorder %s20, 1
      %s299 = scalar_select %p298, %s20, 1
      %s300 = scalar_lea.vmem %s4, %s299
      %p302 = scmp.eq.s32.totalorder %s21, 0
      // Predicated region
      $region33: #{_bce_jit.1} parent=31 // pred_check
        %p303 = pneg %p302
      $region34: #{_bce_jit.1} parent=31 // pred_check_branch
        %305 = sbr.rel (%p303) target = $region36
      $region35: #{_bce_jit.1} parent=31 // pred_region
        %306 = vst [vmem:[#allocation2] sm:$0xff] 0.0
        %307 = vst [vmem:[#allocation3] sm:$0xff] 0.0
      $region36: #{_bce_jit.1} parent=31 // pred_fallthru
        _
      %v308 = vld [vmem:[%s272] sm:$0xff]
      %v309 = vld [vmem:[%s288] sm:$0xff]
      %v310 = vmax.f32 %v308, 0.0
      %v311 = vmul.f32 %v308, %v309
      %v312 = vsub.f32 %v310, %v311
      %v313 = vand.u32 2147483647, %v308
      %v314 = vsub.f32 0.0, %v313
      %v315 = vmul.f32 %v314, 1.442695
      %v316 = vpow.pop %v315
      %v317 = vadd.f32 %v316, 1.0
      %v318 = vlog2.pop %v317
      %v319 = vmul.f32 %v318, 0.6931472
      %v320 = vmul.f32 -0.5, %v316
      %v321 = vadd.f32 %v320, 1.0
      %v322 = vmul.f32 %v321, %v316
      %v323 = vand.u32 2147483647, %v316
      %vm324 = vcmp.lt.f32.partialorder %v323, 0.0004427343
      %v325 = vsel %vm324, %v322, %v319
      %v326 = vadd.f32 %v312, %v325
      %v327 = vpack.c.bf16 %v309, %v309
      %v328 = vld [vmem:[%s2] sm:$0xf]
      %v329 = vld [vmem:[%s2 + $0x4] sm:$0xf]
      %v330 = vld [vmem:[%s2 + $0x8] sm:$0xf]
      %v331 = vld [vmem:[%s2 + $0xc] sm:$0xf]
      %v332 = vld [vmem:[%s2 + $0x10] sm:$0xf]
      %v333 = vld [vmem:[%s2 + $0x14] sm:$0xf]
      %v334 = vld [vmem:[%s2 + $0x18] sm:$0xf]
      %v335 = vld [vmem:[%s2 + $0x1c] sm:$0xf]
      %v336 = vld [vmem:[%s2 + $0x20] sm:$0xf]
      %v337 = vld [vmem:[%s2 + $0x24] sm:$0xf]
      %v338 = vld [vmem:[%s2 + $0x28] sm:$0xf]
      %v339 = vld [vmem:[%s2 + $0x2c] sm:$0xf]
      %v340 = vld [vmem:[%s2 + $0x30] sm:$0xf]
      %v341 = vld [vmem:[%s2 + $0x34] sm:$0xf]
      %v342 = vld [vmem:[%s2 + $0x38] sm:$0xf]
      %v343 = vld [vmem:[%s2 + $0x3c] sm:$0xf]
      %v360 = vunpack.c.l.b16 %v328
      %v361 = vunpack.c.l.b16 %v329
      %v362 = vunpack.c.l.b16 %v330
      %v363 = vunpack.c.l.b16 %v331
      %v364 = vunpack.c.l.b16 %v332
      %v365 = vunpack.c.l.b16 %v333
      %v366 = vunpack.c.l.b16 %v334
      %v367 = vunpack.c.l.b16 %v335
      %v368 = vunpack.c.l.b16 %v336
      %v369 = vunpack.c.l.b16 %v337
      %v370 = vunpack.c.l.b16 %v338
      %v371 = vunpack.c.l.b16 %v339
      %v372 = vunpack.c.l.b16 %v340
      %v373 = vunpack.c.l.b16 %v341
      %v374 = vunpack.c.l.b16 %v342
      %v375 = vunpack.c.l.b16 %v343
      %v376 = vpack.c.b16 %v361, %v360
      %v377 = vpack.c.b16 %v363, %v362
      %v378 = vpack.c.b16 %v365, %v364
      %v379 = vpack.c.b16 %v367, %v366
      %v380 = vpack.c.b16 %v369, %v368
      %v381 = vpack.c.b16 %v371, %v370
      %v382 = vpack.c.b16 %v373, %v372
      %v383 = vpack.c.b16 %v375, %v374
      %392 = vmatprep.subr.bf16.mxu0 0
      %393 = vmatpush1.bf16.msra.mxu0 %v376
      %394 = vmatprep.subr.bf16.mxu0 0
      %395 = vmatpush1.bf16.msra.mxu0 %v377
      %396 = vmatprep.subr.bf16.mxu0 0
      %397 = vmatpush1.bf16.msra.mxu0 %v378
      %398 = vmatprep.subr.bf16.mxu0 0
      %399 = vmatpush1.bf16.msra.mxu0 %v379
      %400 = vmatprep.subr.bf16.mxu0 0
      %401 = vmatpush1.bf16.msra.mxu0 %v380
      %402 = vmatprep.subr.bf16.mxu0 0
      %403 = vmatpush1.bf16.msra.mxu0 %v381
      %404 = vmatprep.subr.bf16.mxu0 0
      %405 = vmatpush1.bf16.msra.mxu0 %v382
      %406 = vmatprep.subr.bf16.mxu0 0
      %407 = vmatpush1.bf16.msra.mxu0 %v383
      %408 = vmatprep.subr.bf16.mxu0 0
      %409 = vmatpush1.bf16.msra.mxu0 0
      %410 = vmatprep.subr.bf16.mxu0 0
      %411 = vmatpush1.bf16.msra.mxu0 0
      %412 = vmatprep.subr.bf16.mxu0 0
      %413 = vmatpush1.bf16.msra.mxu0 0
      %414 = vmatprep.subr.bf16.mxu0 0
      %415 = vmatpush1.bf16.msra.mxu0 0
      %416 = vmatprep.subr.bf16.mxu0 0
      %417 = vmatpush1.bf16.msra.mxu0 0
      %418 = vmatprep.subr.bf16.mxu0 0
      %419 = vmatpush1.bf16.msra.mxu0 0
      %420 = vmatprep.subr.bf16.mxu0 0
      %421 = vmatpush1.bf16.msra.mxu0 0
      %422 = vmatprep.subr.bf16.mxu0 0
      %423 = vmatpush1.bf16.msra.mxu0 0
      %424 = vmatprep.mubr.bf16.mxu0 0
      %425 = vmatmul.mubr.bf16.gmra.mrb[0].mxu0 %v327
      %v426 = vpop.f32.mrb[0].mxu0
      %v427 = vadd.f32 0.0, %v426
      %v428 = vpop.f32.mrb[0].mxu0
      %v429 = vpop.f32.mrb[0].mxu0
      %v430 = vpop.f32.mrb[0].mxu0
      %431 = vdwg.mxu0
      %vm432 = vcmp.gt.f32.partialorder %v427, 0.0
      %s433 = sadd.s32 %s20, %s21
      %p434 = scmp.lt.s32.totalorder %s433, 0
      // Predicated region
      $region37: #{_bce_jit.1} parent=31 // pred_check
        %p435 = pneg %p434
      $region38: #{_bce_jit.1} parent=31 // pred_check_branch
        %437 = sbr.rel (%p435) target = $region40
      $region39: #{_bce_jit.1} parent=31 // pred_region
        %v438 = vld [vmem:[#allocation2] sm:$0xff]
        %v439 = vsel %vm432, %v326, 0.0
        %v440 = vadd.f32 %v439, 0.0
        %v441 = vadd.f32 %v438, %v440
        %442 = vst [vmem:[#allocation2] sm:$0xff] %v441
        %v443 = vld [vmem:[#allocation3] sm:$0xff]
        %v444 = vsel %vm432, 1.0, 0.0
        %v445 = vadd.f32 %v444, 0.0
        %v446 = vadd.f32 %v443, %v445
        %447 = vst [vmem:[#allocation3] sm:$0xff] %v446
      $region40: #{_bce_jit.1} parent=31 // pred_fallthru
        _
      %p448 = scmp.ge.s32.totalorder %s433, 0
      // Predicated region
      $region41: #{_bce_jit.1} parent=31 // pred_check
        %p449 = pneg %p448
      $region42: #{_bce_jit.1} parent=31 // pred_check_branch
        %451 = sbr.rel (%p449) target = $region44
      $region43: #{_bce_jit.1} parent=31 // pred_region
        %s452 = smul.u32 %s433, 8
        %v453 = vlaneseq
        %v454 = vshrl.u32 %v453, 7
        %v455 = vstv %s452
        %v456 = vadd.s32 %v455, %v454
        %vm457 = vcmp.lt.s32.totalorder %v456, 4
        %v458 = vsel %vm457, 1, 0
        %vm459 = vcmp.eq.s32.totalorder %v458, 1
        %vm460 = vmand %vm432, %vm459
        %v461 = vld [vmem:[#allocation2] sm:$0xff]
        %v462 = vsel %vm460, %v326, 0.0
        %v463 = vadd.f32 %v462, 0.0
        %v464 = vadd.f32 %v461, %v463
        %465 = vst [vmem:[#allocation2] sm:$0xff] %v464
        %v466 = vld [vmem:[#allocation3] sm:$0xff]
        %v467 = vsel %vm460, 1.0, 0.0
        %v468 = vadd.f32 %v467, 0.0
        %v469 = vadd.f32 %v466, %v468
        %470 = vst [vmem:[#allocation3] sm:$0xff] %v469
      $region44: #{_bce_jit.1} parent=31 // pred_fallthru
        _
      // Predicated region
      $region45: #{_bce_jit.1} parent=31 // pred_check
        %p471 = pneg %p302
      $region46: #{_bce_jit.1} parent=31 // pred_check_branch
        %473 = sbr.rel (%p471) target = $region48
      $region47: #{_bce_jit.1} parent=31 // pred_region
        %v474 = vld [vmem:[#allocation2] sm:$0xff]
        %v475 = vrot.slane %v474, 4
        %v476 = vadd.f32 %v474, %v475
        %v477 = vrot.slane %v476, 2
        %v478 = vadd.f32 %v476, %v477
        %v479 = vrot.slane %v478, 1
        %v480 = vadd.f32 %v478, %v479
        %481 = vst [vmem:[%s297] sm:$0x1] %v480
        %v482 = vld [vmem:[#allocation3] sm:$0xff]
        %v483 = vrot.slane %v482, 4
        %v484 = vadd.f32 %v482, %v483
        %v485 = vrot.slane %v484, 2
        %v486 = vadd.f32 %v484, %v485
        %v487 = vrot.slane %v486, 1
        %v488 = vadd.f32 %v486, %v487
        %489 = vst [vmem:[%s300] sm:$0x1] %v488
      $region48: #{_bce_jit.1} parent=31 // pred_fallthru
        _
      %p490 = scmp.lt.s32.totalorder %s20, 1
      %s491 = scalar_select %p490, %s20, 1
      %s492 = scalar_lea.vmem %s3, %s491
      %p493 = scmp.lt.s32.totalorder %s20, 1
      %s494 = scalar_select %p493, %s20, 1
      %s495 = scalar_lea.vmem %s4, %s494
      // Predicated region
      $region49: #{_bce_jit.1} parent=31 // pred_check
        %p496 = pneg %p131
      $region50: #{_bce_jit.1} parent=31 // pred_check_branch
        %498 = sbr.rel (%p496) target = $region52
      $region51: #{_bce_jit.1} parent=31 // pred_region
        _
      $region52: #{_bce_jit.1} parent=31 // pred_fallthru
        _
      // Predicated region
      $region53: #{_bce_jit.1} parent=31 // pred_check
        %p499 = pneg %p157
      $region54: #{_bce_jit.1} parent=31 // pred_check_branch
        %501 = sbr.rel (%p499) target = $region56
      $region55: #{_bce_jit.1} parent=31 // pred_region
        _
      $region56: #{_bce_jit.1} parent=31 // pred_fallthru
        _
    $region32: #{_bce_jit.1} parent=5 // pred_fallthru
      _
    %p502 = scmp.le.s32.totalorder 2, %s11
    // Predicated region
    $region57: #{_bce_jit.1} parent=5 // pred_check
      %p503 = pneg %p502
    $region58: #{_bce_jit.1} parent=5 // pred_check_branch
      %505 = sbr.rel (%p503) target = $region60
    $region59: #{_bce_jit.1} parent=5 // pred_region
      %s506 = ssub.s32 %s11, 2
      // Predicated region
      $region61: #{_bce_jit.1} parent=59 // pred_check
        %p507 = pneg %p137
      $region62: #{_bce_jit.1} parent=59 // pred_check_branch
        %509 = sbr.rel (%p507) target = $region64
      $region63: #{_bce_jit.1} parent=59 // pred_region
        %p510 = scmp.lt.s32.totalorder %s22, 1
        %s511 = scalar_select %p510, %s22, 1
        %s512 = scalar_lea.vmem %s3, %s511
      $region64: #{_bce_jit.1} parent=59 // pred_fallthru
        _
      // Predicated region
      $region65: #{_bce_jit.1} parent=59 // pred_check
        %p513 = pneg %p163
      $region66: #{_bce_jit.1} parent=59 // pred_check_branch
        %515 = sbr.rel (%p513) target = $region68
      $region67: #{_bce_jit.1} parent=59 // pred_region
        %p516 = scmp.lt.s32.totalorder %s22, 1
        %s517 = scalar_select %p516, %s22, 1
        %s518 = scalar_lea.vmem %s4, %s517
      $region68: #{_bce_jit.1} parent=59 // pred_fallthru
        _
    $region60: #{_bce_jit.1} parent=5 // pred_fallthru
      _
  $region6: #{_bce_jit.1} parent=0 // loop_footer
    %s15 = sadd.s32 1, %s11
  $region7: #{_bce_jit.1} parent=0 // loop_footer_branch
    %10 = sbr.rel target = $region3
  $region8: #{_bce_jit.1} parent=0 // loop_exit
    _

</llo_original>
